<compile_context>
chip_gen: v5e
topology: v5e:2x2
jax: 0.10.0
libtpu: 0.0.40
codegen_flags: <defaults>
</compile_context>

<pallas_src>
import jax
import jax.numpy as jnp
from jax.experimental import pallas as pl
from jax.experimental.pallas import tpu as pltpu

FOLD = 64                 # batch rows folded into the lane dimension
D_IN, D_H, D_OUT = 10, 5, 3


def folded_mlp_kernel(x_ref, w1_ref, b1_ref, w2_ref, b2_ref, o_ref):
    """x: (tb, FOLD*10) f32; block-diagonal bf16 weights; tiled f32 biases."""
    x = x_ref[...].astype(jnp.bfloat16)
    h = jnp.dot(x, w1_ref[...], preferred_element_type=jnp.float32) + b1_ref[...]
    h = jnp.maximum(h, 0.0)
    y = jnp.dot(h.astype(jnp.bfloat16), w2_ref[...],
                preferred_element_type=jnp.float32) + b2_ref[...]
    o_ref[...] = jnp.maximum(y, 0.0)


def tail_mlp_kernel(x_ref, w1_ref, b1_ref, w2_ref, b2_ref, o_ref):
    """Unfolded tiny tail (< FOLD rows), same bf16-in / f32-accum numerics."""
    x = x_ref[...].astype(jnp.bfloat16)
    h = jnp.dot(x, w1_ref[...].astype(jnp.bfloat16),
                preferred_element_type=jnp.float32) + b1_ref[...]
    h = jnp.maximum(h, 0.0)
    y = jnp.dot(h.astype(jnp.bfloat16), w2_ref[...].astype(jnp.bfloat16),
                preferred_element_type=jnp.float32) + b2_ref[...]
    o_ref[...] = jnp.maximum(y, 0.0)


def _folded_params(w_fc, b_fc, w_fc2, b_fc2, fold):
    """Block-diagonal bf16 weights + lane-tiled f32 biases for the folded layout."""
    eye = jnp.eye(fold, dtype=jnp.float32)
    w1bd = jnp.kron(eye, w_fc.T.astype(jnp.float32)).astype(jnp.bfloat16)   # (fold*10, fold*5)
    w2bd = jnp.kron(eye, w_fc2.T.astype(jnp.float32)).astype(jnp.bfloat16)  # (fold*5, fold*3)
    b1t = jnp.tile(b_fc.astype(jnp.float32), fold).reshape(1, fold * D_H)
    b2t = jnp.tile(b_fc2.astype(jnp.float32), fold).reshape(1, fold * D_OUT)
    return w1bd, b1t, w2bd, b2t


def mock_model_forward(x, w_fc, b_fc, w_fc2, b_fc2, *, block_g=4096):
    """x: (B, 10) f32; weights/biases in PyTorch Linear layout. Returns (B, 3) f32.

    block_g = folded rows (FOLD samples each) per grid step.
    """
    x = x.astype(jnp.float32)
    B = x.shape[0]
    fold = FOLD
    cin, ch, cout = fold * D_IN, fold * D_H, fold * D_OUT
    block_g = max(8, (block_g // 8) * 8)          # keep sublane-aligned tiles

    b_main = (B // fold) * fold                   # fold-aligned prefix
    pieces = []

    if b_main > 0:
        g = b_main // fold
        x_main = x if b_main == B else jax.lax.slice(x, (0, 0), (b_main, D_IN))
        x_fold = x_main.reshape(g, cin)           # free row-major view

        w1bd, b1t, w2bd, b2t = _folded_params(w_fc, b_fc, w_fc2, b_fc2, fold)

        # tb is either the full folded dim or a multiple of 8; a ragged last grid
        # block is handled by Pallas OOB masking (rows are independent in a matmul).
        tb = g if g <= block_g else block_g
        n_blocks = pl.cdiv(g, tb)

        out_fold = pl.pallas_call(
            folded_mlp_kernel,
            out_shape=jax.ShapeDtypeStruct((g, cout), jnp.float32),
            grid=(n_blocks,),
            in_specs=[
                # Batch-tiled, lane-dense activations.
                pl.BlockSpec((tb, cin), lambda i: (i, 0)),
                # VMEM-resident params (constant index_map -> DMA'd once).
                pl.BlockSpec((cin, ch), lambda i: (0, 0)),
                pl.BlockSpec((1, ch), lambda i: (0, 0)),
                pl.BlockSpec((ch, cout), lambda i: (0, 0)),
                pl.BlockSpec((1, cout), lambda i: (0, 0)),
            ],
            out_specs=pl.BlockSpec((tb, cout), lambda i: (i, 0)),
            compiler_params=pltpu.CompilerParams(
                dimension_semantics=("parallel",),          # megacore on v7x
                vmem_limit_bytes=48 * 1024 * 1024,          # fits v7x 64 MiB/TC
            ),
        )(x_fold, w1bd, b1t, w2bd, b2t)
        pieces.append(out_fold.reshape(b_main, D_OUT))

    if b_main < B:
        # < FOLD leftover rows: tiny single-step call, whole operands in VMEM.
        bt = B - b_main
        x_tail = x if b_main == 0 else jax.lax.slice(x, (b_main, 0), (B, D_IN))
        out_tail = pl.pallas_call(
            tail_mlp_kernel,
            out_shape=jax.ShapeDtypeStruct((bt, D_OUT), jnp.float32),
        )(x_tail,
          w_fc.T.astype(jnp.float32),
          b_fc.reshape(1, D_H).astype(jnp.float32),
          w_fc2.T.astype(jnp.float32),
          b_fc2.reshape(1, D_OUT).astype(jnp.float32))
        pieces.append(out_tail)

    return pieces[0] if len(pieces) == 1 else jnp.concatenate(pieces, axis=0)


def reference_forward(x, w_fc, b_fc, w_fc2, b_fc2):
    h = jnp.maximum(x @ w_fc.T + b_fc, 0.0)
    return jnp.maximum(h @ w_fc2.T + b_fc2, 0.0)


def init_params(key):
    """Deterministic init mirroring torch.nn.Linear shapes ((out, in) weights)."""
    k1, k2, k3, k4 = jax.random.split(key, 4)
    w_fc = jax.random.uniform(k1, (5, 10), jnp.float32, -0.3, 0.3)   # fc: Linear(10, 5)
    b_fc = jax.random.uniform(k2, (5,), jnp.float32, -0.3, 0.3)
    w_fc2 = jax.random.uniform(k3, (3, 5), jnp.float32, -0.4, 0.4)   # fc2: Linear(5, 3)
    b_fc2 = jax.random.uniform(k4, (3,), jnp.float32, -0.4, 0.4)
    return w_fc, b_fc, w_fc2, b_fc2


if __name__ == "__main__":
    key = jax.random.PRNGKey(0)
    k_x, k_p = jax.random.split(key)
    params = init_params(k_p)

    # (batch, extra kwargs) — exercises: tail-only (<64 rows), fold-aligned single
    # block, and multi-block grid with a ragged last block + unfolded tail.
    cases = [(8, {}), (128, {}), (2500, {"block_g": 8})]

    for idx, (bsz, kwargs) in enumerate(cases):
        kx = jax.random.fold_in(k_x, idx)
        xb = jax.random.normal(kx, (bsz, D_IN), jnp.float32)
        out = jax.block_until_ready(mock_model_forward(xb, *params, **kwargs))
        ref = reference_forward(xb, *params)
        assert out.shape == (bsz, D_OUT), f"bad shape for batch={bsz}"
        # bf16 inputs/weights inside the matmuls -> loose tolerance vs f32 ref.
        assert jnp.allclose(out, ref, atol=5e-2, rtol=5e-2), f"mismatch at batch={bsz}"

    print("KERNEL_OK")
</pallas_src>

<mosaic_0001>
module attributes {stable_mosaic.version = 11 : i64} {
  func.func @tail_mlp_kernel(%arg0: memref<8x10xf32, #tpu.memory_space<vmem>>, %arg1: memref<10x5xf32, #tpu.memory_space<vmem>>, %arg2: memref<1x5xf32, #tpu.memory_space<vmem>>, %arg3: memref<5x3xf32, #tpu.memory_space<vmem>>, %arg4: memref<1x3xf32, #tpu.memory_space<vmem>>, %arg5: memref<8x3xf32, #tpu.memory_space<vmem>>) attributes {dimension_semantics = [], scalar_prefetch = 0 : i64, scratch_operands = 0 : i64, tpu.core_type = #tpu.core_type<tc>} {
    %c0 = arith.constant 0 : index
    %c0_0 = arith.constant 0 : index
    %0 = vector.load %arg0[%c0, %c0_0] : memref<8x10xf32, #tpu.memory_space<vmem>>, vector<8x10xf32>
    %1 = arith.truncf %0 : vector<8x10xf32> to vector<8x10xbf16>
    %c0_1 = arith.constant 0 : index
    %c0_2 = arith.constant 0 : index
    %2 = vector.load %arg1[%c0_1, %c0_2] : memref<10x5xf32, #tpu.memory_space<vmem>>, vector<10x5xf32>
    %3 = arith.truncf %2 : vector<10x5xf32> to vector<10x5xbf16>
    %cst = arith.constant dense<0.000000e+00> : vector<8x5xf32>
    %4 = tpu.matmul %1, %3, %cst {dimension_numbers = #tpu.dot_dimension_numbers<[1], [0], [0], [1], [0, 0, 1, 1], [], []>} : vector<8x10xbf16>, vector<10x5xbf16>, vector<8x5xf32> -> vector<8x5xf32>
    %c0_3 = arith.constant 0 : index
    %c0_4 = arith.constant 0 : index
    %5 = vector.load %arg2[%c0_3, %c0_4] : memref<1x5xf32, #tpu.memory_space<vmem>>, vector<1x5xf32>
    %6 = vector.broadcast %5 : vector<1x5xf32> to vector<8x5xf32>
    %7 = arith.addf %4, %6 : vector<8x5xf32>
    %cst_5 = arith.constant 0.000000e+00 : f32
    %8 = vector.broadcast %cst_5 : f32 to vector<8x5xf32>
    %9 = arith.maximumf %7, %8 : vector<8x5xf32>
    %10 = arith.truncf %9 : vector<8x5xf32> to vector<8x5xbf16>
    %c0_6 = arith.constant 0 : index
    %c0_7 = arith.constant 0 : index
    %11 = vector.load %arg3[%c0_6, %c0_7] : memref<5x3xf32, #tpu.memory_space<vmem>>, vector<5x3xf32>
    %12 = arith.truncf %11 : vector<5x3xf32> to vector<5x3xbf16>
    %cst_8 = arith.constant dense<0.000000e+00> : vector<8x3xf32>
    %13 = tpu.matmul %10, %12, %cst_8 {dimension_numbers = #tpu.dot_dimension_numbers<[1], [0], [0], [1], [0, 0, 1, 1], [], []>} : vector<8x5xbf16>, vector<5x3xbf16>, vector<8x3xf32> -> vector<8x3xf32>
    %c0_9 = arith.constant 0 : index
    %c0_10 = arith.constant 0 : index
    %14 = vector.load %arg4[%c0_9, %c0_10] : memref<1x3xf32, #tpu.memory_space<vmem>>, vector<1x3xf32>
    %15 = vector.broadcast %14 : vector<1x3xf32> to vector<8x3xf32>
    %16 = arith.addf %13, %15 : vector<8x3xf32>
    %cst_11 = arith.constant 0.000000e+00 : f32
    %17 = vector.broadcast %cst_11 : f32 to vector<8x3xf32>
    %18 = arith.maximumf %16, %17 : vector<8x3xf32>
    %c0_12 = arith.constant 0 : index
    %c0_13 = arith.constant 0 : index
    %19 = vector.load %arg5[%c0_12, %c0_13] : memref<8x3xf32, #tpu.memory_space<vmem>>, vector<8x3xf32>
    tpu.vector_store %arg5[%c0_12, %c0_13], %18 {strides = array<i32>} : memref<8x3xf32, #tpu.memory_space<vmem>>, vector<8x3xf32>,
    return
  }
}

</mosaic_0001>

<llo_original>
// kernel: tpu_custom_call.1
$region0: #{tpu_custom_call.1}
  #allocation0 [shape = 'u32[]', space=smem, size = 0x4, offset = 0x4, fixed_abs, tag = 'smem constant byte address 0x4 - core index']
  #allocation1 [shape = 'u32[72,128]{1,0:T(1,128)}', space=vmem, size = 0x9000, scoped, tag = 'internal scratch']
  %s0 = inlined_call_operand.vmem [shape: f32[8,10], index: 0, kind: input, shape index: {}]
  %s1 = inlined_call_operand.vmem [shape: f32[10,5], index: 1, kind: input, shape index: {}]
  %s2 = inlined_call_operand.vmem [shape: f32[1,5], index: 2, kind: input, shape index: {}]
  %s3 = inlined_call_operand.vmem [shape: f32[5,3], index: 3, kind: input, shape index: {}]
  %s4 = inlined_call_operand.vmem [shape: f32[1,3], index: 4, kind: input, shape index: {}]
  %s5 = inlined_call_operand.vmem [shape: f32[8,3], index: 5, kind: output, shape index: {}]
  %s6 = sld [smem:[#allocation0]]
  $region30: #{tpu_custom_call.1} parent=0
    _
  %s8 = ssub.s32 1, %s6
  %s9 = scalar_select 0, %s8, %s6
  // Predicated region
  $region2: #{tpu_custom_call.1} parent=0 // pred_check
    _
  $region3: #{tpu_custom_call.1} parent=0 // pred_check_branch
    %11 = sbr.rel (0) target = $region5
  $region4: #{tpu_custom_call.1} parent=0 // pred_region
    _
  $region5: #{tpu_custom_call.1} parent=0 // pred_fallthru
    _
  // Predicated region
  $region6: #{tpu_custom_call.1} parent=0 // pred_check
    _
  $region7: #{tpu_custom_call.1} parent=0 // pred_check_branch
    %13 = sbr.rel (0) target = $region9
  $region8: #{tpu_custom_call.1} parent=0 // pred_region
    _
  $region9: #{tpu_custom_call.1} parent=0 // pred_fallthru
    _
  // Predicated region
  $region10: #{tpu_custom_call.1} parent=0 // pred_check
    _
  $region11: #{tpu_custom_call.1} parent=0 // pred_check_branch
    %15 = sbr.rel (0) target = $region13
  $region12: #{tpu_custom_call.1} parent=0 // pred_region
    _
  $region13: #{tpu_custom_call.1} parent=0 // pred_fallthru
    _
  // Predicated region
  $region14: #{tpu_custom_call.1} parent=0 // pred_check
    _
  $region15: #{tpu_custom_call.1} parent=0 // pred_check_branch
    %17 = sbr.rel (0) target = $region17
  $region16: #{tpu_custom_call.1} parent=0 // pred_region
    _
  $region17: #{tpu_custom_call.1} parent=0 // pred_fallthru
    _
  // Predicated region
  $region18: #{tpu_custom_call.1} parent=0 // pred_check
    _
  $region19: #{tpu_custom_call.1} parent=0 // pred_check_branch
    %19 = sbr.rel (0) target = $region21
  $region20: #{tpu_custom_call.1} parent=0 // pred_region
    _
  $region21: #{tpu_custom_call.1} parent=0 // pred_fallthru
    _
  %v21 = vld [vmem:[%s0] sm:$0xff]
  %v22 = vpack.c.bf16 %v21, %v21
  %v23 = vld [vmem:[%s1] sm:$0xff]
  %v24 = vld [vmem:[%s1 + $0x8] sm:$0x3]
  %v25 = vpack.c.bf16 %v24, %v23
  %v26 = vld [vmem:[%s2] sm:$0x1]
  %v28 = vperm.slane %v26, 0
  %vm30 = vcmask 80896
  %v32 = vsel %vm30, %v22, 0
  %vm34 = vcmask 1044480
  %v36 = vsel %vm34, %v25, 0
  %38 = vmatpush.bf16.msra.mxu0 0
  %39 = vmatpush.bf16.msra.mxu0 0
  %40 = vmatpush.bf16.msra.mxu0 0
  %41 = vmatpush.bf16.msra.mxu0 0
  %42 = vmatpush.bf16.msra.mxu0 0
  %43 = vmatpush.bf16.msra.mxu0 0
  %44 = vmatpush.bf16.msra.mxu0 0
  %45 = vmatpush.bf16.msra.mxu0 %v36
  %46 = vmatmul.bf16.gmra.mxu0 %v32
  %v47 = vpop.f32.mrf.mxu0
  %v48 = vadd.f32 %v28, %v47
  %v49 = vpop.f32.mrf.mxu0
  %50 = vdwg.mxu0
  %v51 = vmax.f32 %v48, 0.0
  %v52 = vpack.c.bf16 %v51, %v51
  %v53 = vld [vmem:[%s3] sm:$0x1f]
  %v54 = vpack.c.bf16 %v53, %v53
  %v55 = vld [vmem:[%s4] sm:$0x1]
  %v57 = vperm.slane %v55, 0
  %vm59 = vcmask 39936
  %v61 = vsel %vm59, %v52, 0
  %vm63 = vcmask 1041408
  %vm64 = vcmask 1042432
  %v65 = vsel %vm63, 4294967295, 65535
  %v66 = vsel %vm64, %v65, 0
  %v68 = vand.u32 %v54, %v66
  %70 = vmatpush.bf16.msra.mxu0 0
  %71 = vmatpush.bf16.msra.mxu0 0
  %72 = vmatpush.bf16.msra.mxu0 0
  %73 = vmatpush.bf16.msra.mxu0 0
  %74 = vmatpush.bf16.msra.mxu0 0
  %75 = vmatpush.bf16.msra.mxu0 0
  %76 = vmatpush.bf16.msra.mxu0 0
  %77 = vmatpush.bf16.msra.mxu0 %v68
  %78 = vmatmul.bf16.gmra.mxu0 %v61
  %v79 = vpop.f32.mrf.mxu0
  %v80 = vadd.f32 %v57, %v79
  %v81 = vpop.f32.mrf.mxu0
  %82 = vdwg.mxu0
  %v83 = vmax.f32 %v80, 0.0
  %vm84 = vcmask 23552
  %85 = vst.msk [vmem:[%s5] sm:$0xff] %vm84, %v83
  // Predicated region
  $region22: #{tpu_custom_call.1} parent=0 // pred_check
    _
  $region23: #{tpu_custom_call.1} parent=0 // pred_check_branch
    %87 = sbr.rel (0) target = $region25
  $region24: #{tpu_custom_call.1} parent=0 // pred_region
    _
  $region25: #{tpu_custom_call.1} parent=0 // pred_fallthru
    _
  // Predicated region
  $region26: #{tpu_custom_call.1} parent=0 // pred_check
    _
  $region27: #{tpu_custom_call.1} parent=0 // pred_check_branch
    %89 = sbr.rel (0) target = $region29
  $region28: #{tpu_custom_call.1} parent=0 // pred_region
    _
  $region29: #{tpu_custom_call.1} parent=0 // pred_fallthru
    _

</llo_original>
